<compile_context>
chip_gen: v6e
topology: v6e:2x2x1
jax: 0.10.0
libtpu: 0.0.40
codegen_flags: <defaults>
</compile_context>

<pallas_src>
import jax
import jax.numpy as jnp
from jax.experimental import pallas as pl
from jax.experimental.pallas import tpu as pltpu

# ---------------- model dimensions ------------------------------------------
BATCH = 2
N_MELS = 16            # mel channels (PyTorch "C" of the NCW input)
T_FRAMES = 16          # mel time frames
SEQ = 8                # token sequence length
HIDDEN = 32            # shared hidden size
VOCAB = 32             # phoneme vocabulary
PRN_CLF_OUT_DIM = 44   # phoneme classes
MDN_CLF_OUT_DIM = 2    # correct / mispronounced

CLF_PAD = 128          # lane-dense combined classifier width
MDN_COL = 64           # column offset of the MDN head inside the padded slab

PRN_ROWS = BATCH * T_FRAMES   # 32
MDN_ROWS = BATCH * SEQ        # 16
TOTAL_ROWS = PRN_ROWS + MDN_ROWS  # 48


# ---------------- fused Pallas kernel ----------------------------------------
def _dhvani_kernel(x_ref, tok_ref, mel_wb_ref, embphe_wb_ref,
                   dec_wb_ref, word_wb_ref, clf_wb_ref, out_ref):
    """Fused PRN + MDN forward.

    x_ref        : (B*T, N_MELS)       mel frames, feature-last
    tok_ref      : (B*S, 1) int32      phoneme token ids
    mel_wb_ref   : (N_MELS+1, H)       MelSpectrogramEncoder, bias as last row
    embphe_wb_ref: (VOCAB+1, H)        pre-fused emb_table @ W_phe, bias row
    dec_wb_ref   : (H+1, H)            shared PhonemeDecoder
    word_wb_ref  : (H+1, H)            WordDecoder
    clf_wb_ref   : (H+1, 128)          combined PRN|MDN classifier (zero pad)
    out_ref      : (48, 128)           lane-dense logits slab
    """
    f32 = jnp.float32

    def affine(h, wb_ref, fan_in, relu=True):
        w = wb_ref[:fan_in, :]
        b = wb_ref[fan_in:fan_in + 1, :]
        o = jnp.dot(h, w, preferred_element_type=f32) + b
        return jnp.maximum(o, 0.0) if relu else o

    # --- PRN branch: MelSpectrogramEncoder (Linear + ReLU) -------------------
    h_prn = affine(x_ref[...], mel_wb_ref, N_MELS)                 # (32, H)

    # --- MDN branch: embedding gather + PhonemeEncoder in ONE MXU pass -------
    # relu(onehot @ emb_table @ W_phe + b_phe) == relu(onehot @ fused + b_phe)
    tok = tok_ref[...]                                             # (16, 1)
    onehot = (tok == jax.lax.broadcasted_iota(
        jnp.int32, (MDN_ROWS, VOCAB), 1)).astype(f32)              # (16, V)
    h_mdn = affine(onehot, embphe_wb_ref, VOCAB)                   # (16, H)

    # --- shared PhonemeDecoder: one MXU pass over both branches --------------
    slab = jnp.concatenate([h_prn, h_mdn], axis=0)                 # (48, H)
    h_dec = affine(slab, dec_wb_ref, HIDDEN)                       # (48, H)

    h_prn2 = h_dec[:PRN_ROWS, :]                                   # (32, H)
    h_mdn2 = h_dec[PRN_ROWS:, :]                                   # (16, H)

    # --- WordDecoder (MDN branch only) ---------------------------------------
    h_mdn3 = affine(h_mdn2, word_wb_ref, HIDDEN)                   # (16, H)

    # --- combined lane-dense classification heads (no ReLU) ------------------
    pre = jnp.concatenate([h_prn2, h_mdn3], axis=0)                # (48, H)
    logits = affine(pre, clf_wb_ref, HIDDEN, relu=False)           # (48, 128)
    out_ref[...] = logits.astype(out_ref.dtype)


# ---------------- wrapper -----------------------------------------------------
_VMEM = pl.BlockSpec(memory_space=pltpu.MemorySpace.VMEM)


def dhvani_forward(ms, tokens, params):
    """ms: (B, N_MELS, T) f32, tokens: (B, S) int32 ->
       (prn (B,T,44), mdn (B,S,2))."""
    B, C, T = ms.shape
    _, S = tokens.shape

    # NCW -> rows-last-feature (B*T, C): mel dim on lanes, frames on sublanes.
    x = jnp.transpose(ms, (0, 2, 1)).reshape(B * T, C)
    tok = tokens.reshape(B * S, 1).astype(jnp.int32)

    args = (x, tok,
            params["mel_wb"], params["embphe_wb"], params["dec_wb"],
            params["word_wb"], params["clf_wb"])

    flops = 2 * (B * T * C * HIDDEN                 # mel encoder
                 + B * S * VOCAB * HIDDEN           # fused gather+phoneme enc
                 + TOTAL_ROWS * HIDDEN * HIDDEN     # shared decoder
                 + B * S * HIDDEN * HIDDEN          # word decoder
                 + TOTAL_ROWS * HIDDEN * CLF_PAD)   # combined heads
    bytes_accessed = sum(int(a.size) * a.dtype.itemsize for a in args) \
        + TOTAL_ROWS * CLF_PAD * 4

    out = pl.pallas_call(
        _dhvani_kernel,
        out_shape=jax.ShapeDtypeStruct((TOTAL_ROWS, CLF_PAD), jnp.float32),
        in_specs=[_VMEM] * len(args),
        out_specs=_VMEM,
        compiler_params=pltpu.CompilerParams(vmem_limit_bytes=16 * 1024 * 1024),
        cost_estimate=pl.CostEstimate(flops=flops, transcendentals=0,
                                      bytes_accessed=bytes_accessed),
    )(*args)

    prn = out[:B * T, :PRN_CLF_OUT_DIM].reshape(B, T, PRN_CLF_OUT_DIM)
    mdn = out[B * T:, MDN_COL:MDN_COL + MDN_CLF_OUT_DIM].reshape(
        B, S, MDN_CLF_OUT_DIM)
    return prn, mdn


# ---------------- deterministic parameter init --------------------------------
def init_params(key):
    ks = jax.random.split(key, 7)

    def lin(k, fan_in, fan_out):
        scale = fan_in ** -0.5
        kw, kb = jax.random.split(k)
        w = jax.random.uniform(kw, (fan_in, fan_out), jnp.float32, -scale, scale)
        b = jax.random.uniform(kb, (1, fan_out), jnp.float32, -scale, scale)
        return w, b

    mel_w, mel_b = lin(ks[0], N_MELS, HIDDEN)        # MelSpectrogramEncoder
    phe_w, phe_b = lin(ks[1], HIDDEN, HIDDEN)        # PhonemeEncoder proj
    dec_w, dec_b = lin(ks[2], HIDDEN, HIDDEN)        # PhonemeDecoder (SHARED)
    word_w, word_b = lin(ks[3], HIDDEN, HIDDEN)      # WordDecoder
    prn_w, prn_b = lin(ks[4], HIDDEN, PRN_CLF_OUT_DIM)
    mdn_w, mdn_b = lin(ks[5], HIDDEN, MDN_CLF_OUT_DIM)
    emb = jax.random.normal(ks[6], (VOCAB, HIDDEN), jnp.float32) * 0.02

    # Pre-fuse embedding lookup with the PhonemeEncoder projection (one-time
    # init cost, removes a matmul + an input ref from every kernel call).
    embphe_w = emb @ phe_w                           # (VOCAB, HIDDEN)

    # Lane-dense combined classifier: PRN head -> cols [0,44),
    # MDN head -> cols [64,66), padding zero-initialized (sliced off in wrapper).
    clf_w = jnp.zeros((HIDDEN, CLF_PAD), jnp.float32)
    clf_w = clf_w.at[:, :PRN_CLF_OUT_DIM].set(prn_w)
    clf_w = clf_w.at[:, MDN_COL:MDN_COL + MDN_CLF_OUT_DIM].set(mdn_w)
    clf_b = jnp.zeros((1, CLF_PAD), jnp.float32)
    clf_b = clf_b.at[:, :PRN_CLF_OUT_DIM].set(prn_b)
    clf_b = clf_b.at[:, MDN_COL:MDN_COL + MDN_CLF_OUT_DIM].set(mdn_b)

    def pack(w, b):  # bias folded in as the last row
        return jnp.concatenate([w, b], axis=0)

    return dict(
        mel_wb=pack(mel_w, mel_b),
        embphe_wb=pack(embphe_w, phe_b),
        dec_wb=pack(dec_w, dec_b),
        word_wb=pack(word_w, word_b),
        clf_wb=pack(clf_w, clf_b),
        _raw=dict(mel_w=mel_w, mel_b=mel_b, phe_w=phe_w, phe_b=phe_b,
                  dec_w=dec_w, dec_b=dec_b, word_w=word_w, word_b=word_b,
                  prn_w=prn_w, prn_b=prn_b, mdn_w=mdn_w, mdn_b=mdn_b, emb=emb),
    )


# ---------------- pure-JAX reference ------------------------------------------
def _reference(ms, tokens, params):
    r = params["_raw"]
    B, C, T = ms.shape
    x = jnp.transpose(ms, (0, 2, 1)).reshape(B * T, C)
    h = jnp.maximum(x @ r["mel_w"] + r["mel_b"], 0.0)
    h = jnp.maximum(h @ r["dec_w"] + r["dec_b"], 0.0)
    prn = (h @ r["prn_w"] + r["prn_b"]).reshape(B, T, PRN_CLF_OUT_DIM)

    e = r["emb"][tokens].reshape(-1, HIDDEN)
    h = jnp.maximum(e @ r["phe_w"] + r["phe_b"], 0.0)
    h = jnp.maximum(h @ r["dec_w"] + r["dec_b"], 0.0)
    h = jnp.maximum(h @ r["word_w"] + r["word_b"], 0.0)
    mdn = (h @ r["mdn_w"] + r["mdn_b"]).reshape(BATCH, SEQ, MDN_CLF_OUT_DIM)
    return prn, mdn


if __name__ == "__main__":
    key = jax.random.PRNGKey(0)
    k_ms, k_tok, k_param = jax.random.split(key, 3)

    ms = jax.random.normal(k_ms, (BATCH, N_MELS, T_FRAMES), jnp.float32)
    tokens = jax.random.randint(k_tok, (BATCH, SEQ), 0, VOCAB, jnp.int32)
    params = init_params(k_param)

    fwd = jax.jit(dhvani_forward)
    prn_out, mdn_out = jax.block_until_ready(fwd(ms, tokens, params))

    prn_ref, mdn_ref = _reference(ms, tokens, params)
    assert prn_out.shape == (BATCH, T_FRAMES, PRN_CLF_OUT_DIM)
    assert mdn_out.shape == (BATCH, SEQ, MDN_CLF_OUT_DIM)
    assert jnp.allclose(prn_out, prn_ref, atol=1e-4, rtol=1e-4)
    assert jnp.allclose(mdn_out, mdn_ref, atol=1e-4, rtol=1e-4)

    print("KERNEL_OK")
</pallas_src>

<mosaic_0001>
module attributes {stable_mosaic.version = 11 : i64} {
  func.func @_dhvani_kernel(%arg0: memref<32x16xf32, #tpu.memory_space<vmem>>, %arg1: memref<16x1xi32, #tpu.memory_space<vmem>>, %arg2: memref<17x32xf32, #tpu.memory_space<vmem>>, %arg3: memref<33x32xf32, #tpu.memory_space<vmem>>, %arg4: memref<33x32xf32, #tpu.memory_space<vmem>>, %arg5: memref<33x32xf32, #tpu.memory_space<vmem>>, %arg6: memref<33x128xf32, #tpu.memory_space<vmem>>, %arg7: memref<48x128xf32, #tpu.memory_space<vmem>>) attributes {dimension_semantics = [], scalar_prefetch = 0 : i64, scratch_operands = 0 : i64, tpu.core_type = #tpu.core_type<tc>} {
    %c0 = arith.constant 0 : index
    %c0_0 = arith.constant 0 : index
    %0 = vector.load %arg0[%c0, %c0_0] : memref<32x16xf32, #tpu.memory_space<vmem>>, vector<32x16xf32>
    %c0_1 = arith.constant 0 : index
    %c0_2 = arith.constant 0 : index
    %1 = vector.load %arg2[%c0_1, %c0_2] : memref<17x32xf32, #tpu.memory_space<vmem>>, vector<16x32xf32>
    %c16 = arith.constant 16 : index
    %c0_3 = arith.constant 0 : index
    %2 = vector.load %arg2[%c16, %c0_3] : memref<17x32xf32, #tpu.memory_space<vmem>>, vector<1x32xf32>
    %cst = arith.constant dense<0.000000e+00> : vector<32x32xf32>
    %3 = tpu.matmul %0, %1, %cst {dimension_numbers = #tpu.dot_dimension_numbers<[1], [0], [0], [1], [0, 0, 1, 1], [], []>} : vector<32x16xf32>, vector<16x32xf32>, vector<32x32xf32> -> vector<32x32xf32>
    %4 = vector.broadcast %2 : vector<1x32xf32> to vector<32x32xf32>
    %5 = arith.addf %3, %4 : vector<32x32xf32>
    %cst_4 = arith.constant 0.000000e+00 : f32
    %6 = vector.broadcast %cst_4 : f32 to vector<32x32xf32>
    %7 = arith.maximumf %5, %6 : vector<32x32xf32>
    %c0_5 = arith.constant 0 : index
    %c0_6 = arith.constant 0 : index
    %8 = vector.load %arg1[%c0_5, %c0_6] : memref<16x1xi32, #tpu.memory_space<vmem>>, vector<16x1xi32>
    %9 = tpu.iota {dimensions = array<i32: 1>} : vector<16x32xi32>
    %10 = vector.broadcast %8 : vector<16x1xi32> to vector<16x32xi32>
    %11 = arith.cmpi eq, %10, %9 : vector<16x32xi32>
    %12 = arith.extui %11 : vector<16x32xi1> to vector<16x32xi32>
    %13 = arith.sitofp %12 : vector<16x32xi32> to vector<16x32xf32>
    %c0_7 = arith.constant 0 : index
    %c0_8 = arith.constant 0 : index
    %14 = vector.load %arg3[%c0_7, %c0_8] : memref<33x32xf32, #tpu.memory_space<vmem>>, vector<32x32xf32>
    %c32 = arith.constant 32 : index
    %c0_9 = arith.constant 0 : index
    %15 = vector.load %arg3[%c32, %c0_9] : memref<33x32xf32, #tpu.memory_space<vmem>>, vector<1x32xf32>
    %cst_10 = arith.constant dense<0.000000e+00> : vector<16x32xf32>
    %16 = tpu.matmul %13, %14, %cst_10 {dimension_numbers = #tpu.dot_dimension_numbers<[1], [0], [0], [1], [0, 0, 1, 1], [], []>} : vector<16x32xf32>, vector<32x32xf32>, vector<16x32xf32> -> vector<16x32xf32>
    %17 = vector.broadcast %15 : vector<1x32xf32> to vector<16x32xf32>
    %18 = arith.addf %16, %17 : vector<16x32xf32>
    %cst_11 = arith.constant 0.000000e+00 : f32
    %19 = vector.broadcast %cst_11 : f32 to vector<16x32xf32>
    %20 = arith.maximumf %18, %19 : vector<16x32xf32>
    %21 = tpu.concatenate %7, %20 in 0 : vector<32x32xf32>, vector<16x32xf32> -> vector<48x32xf32>
    %c0_12 = arith.constant 0 : index
    %c0_13 = arith.constant 0 : index
    %22 = vector.load %arg4[%c0_12, %c0_13] : memref<33x32xf32, #tpu.memory_space<vmem>>, vector<32x32xf32>
    %c32_14 = arith.constant 32 : index
    %c0_15 = arith.constant 0 : index
    %23 = vector.load %arg4[%c32_14, %c0_15] : memref<33x32xf32, #tpu.memory_space<vmem>>, vector<1x32xf32>
    %cst_16 = arith.constant dense<0.000000e+00> : vector<48x32xf32>
    %24 = tpu.matmul %21, %22, %cst_16 {dimension_numbers = #tpu.dot_dimension_numbers<[1], [0], [0], [1], [0, 0, 1, 1], [], []>} : vector<48x32xf32>, vector<32x32xf32>, vector<48x32xf32> -> vector<48x32xf32>
    %25 = vector.broadcast %23 : vector<1x32xf32> to vector<48x32xf32>
    %26 = arith.addf %24, %25 : vector<48x32xf32>
    %cst_17 = arith.constant 0.000000e+00 : f32
    %27 = vector.broadcast %cst_17 : f32 to vector<48x32xf32>
    %28 = arith.maximumf %26, %27 : vector<48x32xf32>
    %29 = vector.extract_strided_slice %28 {offsets = [0, 0], sizes = [32, 32], strides = [1, 1]} : vector<48x32xf32> to vector<32x32xf32>
    %30 = vector.extract_strided_slice %28 {offsets = [32, 0], sizes = [16, 32], strides = [1, 1]} : vector<48x32xf32> to vector<16x32xf32>
    %c0_18 = arith.constant 0 : index
    %c0_19 = arith.constant 0 : index
    %31 = vector.load %arg5[%c0_18, %c0_19] : memref<33x32xf32, #tpu.memory_space<vmem>>, vector<32x32xf32>
    %c32_20 = arith.constant 32 : index
    %c0_21 = arith.constant 0 : index
    %32 = vector.load %arg5[%c32_20, %c0_21] : memref<33x32xf32, #tpu.memory_space<vmem>>, vector<1x32xf32>
    %cst_22 = arith.constant dense<0.000000e+00> : vector<16x32xf32>
    %33 = tpu.matmul %30, %31, %cst_22 {dimension_numbers = #tpu.dot_dimension_numbers<[1], [0], [0], [1], [0, 0, 1, 1], [], []>} : vector<16x32xf32>, vector<32x32xf32>, vector<16x32xf32> -> vector<16x32xf32>
    %34 = vector.broadcast %32 : vector<1x32xf32> to vector<16x32xf32>
    %35 = arith.addf %33, %34 : vector<16x32xf32>
    %cst_23 = arith.constant 0.000000e+00 : f32
    %36 = vector.broadcast %cst_23 : f32 to vector<16x32xf32>
    %37 = arith.maximumf %35, %36 : vector<16x32xf32>
    %38 = tpu.concatenate %29, %37 in 0 : vector<32x32xf32>, vector<16x32xf32> -> vector<48x32xf32>
    %c0_24 = arith.constant 0 : index
    %c0_25 = arith.constant 0 : index
    %39 = vector.load %arg6[%c0_24, %c0_25] : memref<33x128xf32, #tpu.memory_space<vmem>>, vector<32x128xf32>
    %c32_26 = arith.constant 32 : index
    %c0_27 = arith.constant 0 : index
    %40 = vector.load %arg6[%c32_26, %c0_27] : memref<33x128xf32, #tpu.memory_space<vmem>>, vector<1x128xf32>
    %cst_28 = arith.constant dense<0.000000e+00> : vector<48x128xf32>
    %41 = tpu.matmul %38, %39, %cst_28 {dimension_numbers = #tpu.dot_dimension_numbers<[1], [0], [0], [1], [0, 0, 1, 1], [], []>} : vector<48x32xf32>, vector<32x128xf32>, vector<48x128xf32> -> vector<48x128xf32>
    %42 = vector.broadcast %40 : vector<1x128xf32> to vector<48x128xf32>
    %43 = arith.addf %41, %42 : vector<48x128xf32>
    %c0_29 = arith.constant 0 : index
    %c0_30 = arith.constant 0 : index
    %44 = vector.load %arg7[%c0_29, %c0_30] : memref<48x128xf32, #tpu.memory_space<vmem>>, vector<48x128xf32>
    tpu.vector_store %arg7[%c0_29, %c0_30], %43 {strides = array<i32>} : memref<48x128xf32, #tpu.memory_space<vmem>>, vector<48x128xf32>,
    return
  }
}

</mosaic_0001>

<llo_original>
// kernel: dhvani_forward.1
$region0: #{dhvani_forward.1}
  #allocation0 [shape = 'u32[]', space=smem, size = 0x4, offset = 0x4, fixed_abs, tag = 'smem constant byte address 0x4 - core index']
  #allocation1 [shape = 'u32[144,128]{1,0:T(1,128)}', space=vmem, size = 0x12000, scoped, tag = 'internal scratch']
  %s0 = inlined_call_operand.vmem [shape: f32[32,16], index: 0, kind: input, shape index: {}]
  %s1 = inlined_call_operand.vmem [shape: s32[16,1], index: 1, kind: input, shape index: {}]
  %s2 = inlined_call_operand.vmem [shape: f32[17,32], index: 2, kind: input, shape index: {}]
  %s3 = inlined_call_operand.vmem [shape: f32[33,32], index: 3, kind: input, shape index: {}]
  %s4 = inlined_call_operand.vmem [shape: f32[33,32], index: 4, kind: input, shape index: {}]
  %s5 = inlined_call_operand.vmem [shape: f32[33,32], index: 5, kind: input, shape index: {}]
  %s6 = inlined_call_operand.vmem [shape: f32[33,128], index: 6, kind: input, shape index: {}]
  %s7 = inlined_call_operand.vmem [shape: f32[48,128], index: 7, kind: output, shape index: {}]
  %s8 = sld [smem:[#allocation0]]
  $region38: #{dhvani_forward.1} parent=0
    _
  %s10 = ssub.s32 1, %s8
  %s11 = scalar_select 0, %s10, %s8
  // Predicated region
  $region2: #{dhvani_forward.1} parent=0 // pred_check
    _
  $region3: #{dhvani_forward.1} parent=0 // pred_check_branch
    %13 = sbr.rel (0) target = $region5
  $region4: #{dhvani_forward.1} parent=0 // pred_region
    _
  $region5: #{dhvani_forward.1} parent=0 // pred_fallthru
    _
  // Predicated region
  $region6: #{dhvani_forward.1} parent=0 // pred_check
    _
  $region7: #{dhvani_forward.1} parent=0 // pred_check_branch
    %15 = sbr.rel (0) target = $region9
  $region8: #{dhvani_forward.1} parent=0 // pred_region
    _
  $region9: #{dhvani_forward.1} parent=0 // pred_fallthru
    _
  // Predicated region
  $region10: #{dhvani_forward.1} parent=0 // pred_check
    _
  $region11: #{dhvani_forward.1} parent=0 // pred_check_branch
    %17 = sbr.rel (0) target = $region13
  $region12: #{dhvani_forward.1} parent=0 // pred_region
    _
  $region13: #{dhvani_forward.1} parent=0 // pred_fallthru
    _
  // Predicated region
  $region14: #{dhvani_forward.1} parent=0 // pred_check
    _
  $region15: #{dhvani_forward.1} parent=0 // pred_check_branch
    %19 = sbr.rel (0) target = $region17
  $region16: #{dhvani_forward.1} parent=0 // pred_region
    _
  $region17: #{dhvani_forward.1} parent=0 // pred_fallthru
    _
  // Predicated region
  $region18: #{dhvani_forward.1} parent=0 // pred_check
    _
  $region19: #{dhvani_forward.1} parent=0 // pred_check_branch
    %21 = sbr.rel (0) target = $region21
  $region20: #{dhvani_forward.1} parent=0 // pred_region
    _
  $region21: #{dhvani_forward.1} parent=0 // pred_fallthru
    _
  // Predicated region
  $region22: #{dhvani_forward.1} parent=0 // pred_check
    _
  $region23: #{dhvani_forward.1} parent=0 // pred_check_branch
    %23 = sbr.rel (0) target = $region25
  $region24: #{dhvani_forward.1} parent=0 // pred_region
    _
  $region25: #{dhvani_forward.1} parent=0 // pred_fallthru
    _
  // Predicated region
  $region26: #{dhvani_forward.1} parent=0 // pred_check
    _
  $region27: #{dhvani_forward.1} parent=0 // pred_check_branch
    %25 = sbr.rel (0) target = $region29
  $region28: #{dhvani_forward.1} parent=0 // pred_region
    _
  $region29: #{dhvani_forward.1} parent=0 // pred_fallthru
    _
  %v26 = vld [vmem:[%s0] sm:$0xff]
  %v27 = vld [vmem:[%s0 + $0x8] sm:$0xff]
  %v28 = vld [vmem:[%s0 + $0x10] sm:$0xff]
  %v29 = vld [vmem:[%s0 + $0x18] sm:$0xff]
  %v30 = vld [vmem:[%s2] sm:$0xff]
  %v31 = vld [vmem:[%s2 + $0x8] sm:$0xff]
  %v32 = vld [vmem:[%s2 + $0x10] sm:$0x1]
  %v33 = vlaneseq
  %v34 = vshrl.u32 %v33, 7
  %v35 = vsub.s32 0, %v34
  %v36 = vrot.slane %v32, %v35
  %vm37 = vcmask 130048
  %v39 = vsel %vm37, %v26, 0
  %v42 = vsel %vm37, %v27, 0
  %v45 = vsel %vm37, %v28, 0
  %v48 = vsel %vm37, %v29, 0
  %50 = vmatprep.subr.mxu0 0.0
  %51 = vmatpush1.msra.mxu0 0.0
  %52 = vmatprep.subr.mxu0 0.0
  %53 = vmatpush1.msra.mxu0 0.0
  %54 = vmatprep.subr.mxu0 0.0
  %55 = vmatpush1.msra.mxu0 0.0
  %56 = vmatprep.subr.mxu0 0.0
  %57 = vmatpush1.msra.mxu0 0.0
  %58 = vmatprep.subr.mxu0 0.0
  %59 = vmatpush1.msra.mxu0 0.0
  %60 = vmatprep.subr.mxu0 0.0
  %61 = vmatpush1.msra.mxu0 0.0
  %62 = vmatprep.subr.mxu0 0.0
  %63 = vmatpush1.msra.mxu0 0.0
  %64 = vmatprep.subr.mxu0 0.0
  %65 = vmatpush1.msra.mxu0 0.0
  %66 = vmatprep.subr.mxu0 0.0
  %67 = vmatpush1.msra.mxu0 0.0
  %68 = vmatprep.subr.mxu0 0.0
  %69 = vmatpush1.msra.mxu0 0.0
  %70 = vmatprep.subr.mxu0 0.0
  %71 = vmatpush1.msra.mxu0 0.0
  %72 = vmatprep.subr.mxu0 0.0
  %73 = vmatpush1.msra.mxu0 0.0
  %74 = vmatprep.subr.mxu0 0.0
  %75 = vmatpush1.msra.mxu0 0.0
  %76 = vmatprep.subr.mxu0 0.0
  %77 = vmatpush1.msra.mxu0 0.0
  %78 = vmatprep.subr.mxu0 0.0
  %79 = vmatpush1.msra.mxu0 %v31
  %80 = vmatprep.subr.mxu0 0.0
  %81 = vmatpush1.msra.mxu0 %v30
  %82 = vmatprep.subr.mxu0 0.0
  %83 = vmatpush2.msra.mxu0 0.0
  %84 = vmatprep.subr.mxu0 0.0
  %85 = vmatpush2.msra.mxu0 0.0
  %86 = vmatprep.subr.mxu0 0.0
  %87 = vmatpush2.msra.mxu0 0.0
  %88 = vmatprep.subr.mxu0 0.0
  %89 = vmatpush2.msra.mxu0 0.0
  %90 = vmatprep.subr.mxu0 0.0
  %91 = vmatpush2.msra.mxu0 0.0
  %92 = vmatprep.subr.mxu0 0.0
  %93 = vmatpush2.msra.mxu0 0.0
  %94 = vmatprep.subr.mxu0 0.0
  %95 = vmatpush2.msra.mxu0 0.0
  %96 = vmatprep.subr.mxu0 0.0
  %97 = vmatpush2.msra.mxu0 0.0
  %98 = vmatprep.subr.mxu0 0.0
  %99 = vmatpush2.msra.mxu0 0.0
  %100 = vmatprep.subr.mxu0 0.0
  %101 = vmatpush2.msra.mxu0 0.0
  %102 = vmatprep.subr.mxu0 0.0
  %103 = vmatpush2.msra.mxu0 0.0
  %104 = vmatprep.subr.mxu0 0.0
  %105 = vmatpush2.msra.mxu0 0.0
  %106 = vmatprep.subr.mxu0 0.0
  %107 = vmatpush2.msra.mxu0 0.0
  %108 = vmatprep.subr.mxu0 0.0
  %109 = vmatpush2.msra.mxu0 0.0
  %110 = vmatprep.subr.mxu0 0.0
  %111 = vmatpush2.msra.mxu0 0.0
  %112 = vmatprep.subr.mxu0 0.0
  %113 = vmatpush2.msra.mxu0 0.0
  %114 = vmatprep.mubr.f32.mxu0 0.0
  %115 = vmatmul.mubr.f32.gmra.mxu0 %v39
  %v116 = vpop.f32.mrf.mxu0
  %v117 = vadd.f32 %v36, %v116
  %v118 = vpop.f32.mrf.mxu0
  %119 = vmatprep.mubr.f32.mxu0 0.0
  %120 = vmatmul.mubr.f32.gmra.mxu0 %v42
  %v121 = vpop.f32.mrf.mxu0
  %v122 = vadd.f32 %v36, %v121
  %v123 = vpop.f32.mrf.mxu0
  %124 = vmatprep.mubr.f32.mxu0 0.0
  %125 = vmatmul.mubr.f32.gmra.mxu0 %v45
  %v126 = vpop.f32.mrf.mxu0
  %v127 = vadd.f32 %v36, %v126
  %v128 = vpop.f32.mrf.mxu0
  %129 = vmatprep.mubr.f32.mxu0 0.0
  %130 = vmatmul.mubr.f32.gmra.mxu0 %v48
  %v131 = vpop.f32.mrf.mxu0
  %v132 = vadd.f32 %v36, %v131
  %v133 = vpop.f32.mrf.mxu0
  %134 = vdwg.mxu0
  %v135 = vmax.f32 %v117, 0.0
  %v136 = vmax.f32 %v122, 0.0
  %v137 = vmax.f32 %v127, 0.0
  %v138 = vmax.f32 %v132, 0.0
  %v139 = vld [vmem:[%s1] sm:$0xff]
  %v140 = vld [vmem:[%s1 + $0x8] sm:$0xff]
  %v141 = vlaneseq
  %v142 = vand.u32 %v141, 127
  %143 = vset.pattern.permute.xlu0 0
  %144 = vperm.xlu0 %143, %v139
  %v145 = vpop.permute.xlu0 %144
  %146 = vset.pattern.permute.xlu0 0
  %147 = vperm.xlu0 %146, %v140
  %v148 = vpop.permute.xlu0 %147
  %vm149 = vcmp.eq.s32.totalorder %v145, %v142
  %vm150 = vcmp.eq.s32.totalorder %v148, %v142
  %v151 = vsel %vm149, 1, 0
  %v152 = vsel %vm150, 1, 0
  %v153 = vcvt.s32.f32 %v151
  %v154 = vcvt.s32.f32 %v152
  %v155 = vld [vmem:[%s3] sm:$0xff]
  %v156 = vld [vmem:[%s3 + $0x8] sm:$0xff]
  %v157 = vld [vmem:[%s3 + $0x10] sm:$0xff]
  %v158 = vld [vmem:[%s3 + $0x18] sm:$0xff]
  %v159 = vld [vmem:[%s3 + $0x20] sm:$0x1]
  %v160 = vlaneseq
  %v161 = vshrl.u32 %v160, 7
  %v162 = vsub.s32 0, %v161
  %v163 = vrot.slane %v159, %v162
  %vm164 = vcmask 261120
  %v166 = vsel %vm164, %v153, 0
  %v169 = vsel %vm164, %v154, 0
  %171 = vmatprep.subr.mxu0 0.0
  %172 = vmatpush1.msra.mxu0 0.0
  %173 = vmatprep.subr.mxu0 0.0
  %174 = vmatpush1.msra.mxu0 0.0
  %175 = vmatprep.subr.mxu0 0.0
  %176 = vmatpush1.msra.mxu0 0.0
  %177 = vmatprep.subr.mxu0 0.0
  %178 = vmatpush1.msra.mxu0 0.0
  %179 = vmatprep.subr.mxu0 0.0
  %180 = vmatpush1.msra.mxu0 0.0
  %181 = vmatprep.subr.mxu0 0.0
  %182 = vmatpush1.msra.mxu0 0.0
  %183 = vmatprep.subr.mxu0 0.0
  %184 = vmatpush1.msra.mxu0 0.0
  %185 = vmatprep.subr.mxu0 0.0
  %186 = vmatpush1.msra.mxu0 0.0
  %187 = vmatprep.subr.mxu0 0.0
  %188 = vmatpush1.msra.mxu0 0.0
  %189 = vmatprep.subr.mxu0 0.0
  %190 = vmatpush1.msra.mxu0 0.0
  %191 = vmatprep.subr.mxu0 0.0
  %192 = vmatpush1.msra.mxu0 0.0
  %193 = vmatprep.subr.mxu0 0.0
  %194 = vmatpush1.msra.mxu0 0.0
  %195 = vmatprep.subr.mxu0 0.0
  %196 = vmatpush1.msra.mxu0 %v158
  %197 = vmatprep.subr.mxu0 0.0
  %198 = vmatpush1.msra.mxu0 %v157
  %199 = vmatprep.subr.mxu0 0.0
  %200 = vmatpush1.msra.mxu0 %v156
  %201 = vmatprep.subr.mxu0 0.0
  %202 = vmatpush1.msra.mxu0 %v155
  %203 = vmatprep.subr.mxu0 0.0
  %204 = vmatpush2.msra.mxu0 0.0
  %205 = vmatprep.subr.mxu0 0.0
  %206 = vmatpush2.msra.mxu0 0.0
  %207 = vmatprep.subr.mxu0 0.0
  %208 = vmatpush2.msra.mxu0 0.0
  %209 = vmatprep.subr.mxu0 0.0
  %210 = vmatpush2.msra.mxu0 0.0
  %211 = vmatprep.subr.mxu0 0.0
  %212 = vmatpush2.msra.mxu0 0.0
  %213 = vmatprep.subr.mxu0 0.0
  %214 = vmatpush2.msra.mxu0 0.0
  %215 = vmatprep.subr.mxu0 0.0
  %216 = vmatpush2.msra.mxu0 0.0
  %217 = vmatprep.subr.mxu0 0.0
  %218 = vmatpush2.msra.mxu0 0.0
  %219 = vmatprep.subr.mxu0 0.0
  %220 = vmatpush2.msra.mxu0 0.0
  %221 = vmatprep.subr.mxu0 0.0
  %222 = vmatpush2.msra.mxu0 0.0
  %223 = vmatprep.subr.mxu0 0.0
  %224 = vmatpush2.msra.mxu0 0.0
  %225 = vmatprep.subr.mxu0 0.0
  %226 = vmatpush2.msra.mxu0 0.0
  %227 = vmatprep.subr.mxu0 0.0
  %228 = vmatpush2.msra.mxu0 0.0
  %229 = vmatprep.subr.mxu0 0.0
  %230 = vmatpush2.msra.mxu0 0.0
  %231 = vmatprep.subr.mxu0 0.0
  %232 = vmatpush2.msra.mxu0 0.0
  %233 = vmatprep.subr.mxu0 0.0
  %234 = vmatpush2.msra.mxu0 0.0
  %235 = vmatprep.mubr.f32.mxu0 0.0
  %236 = vmatmul.mubr.f32.gmra.mxu0 %v166
  %v237 = vpop.f32.mrf.mxu0
  %v238 = vadd.f32 %v163, %v237
  %v239 = vpop.f32.mrf.mxu0
  %240 = vmatprep.mubr.f32.mxu0 0.0
  %241 = vmatmul.mubr.f32.gmra.mxu0 %v169
  %v242 = vpop.f32.mrf.mxu0
  %v243 = vadd.f32 %v163, %v242
  %v244 = vpop.f32.mrf.mxu0
  %245 = vdwg.mxu0
  %v246 = vmax.f32 %v238, 0.0
  %v247 = vmax.f32 %v243, 0.0
  %v248 = vld [vmem:[%s4] sm:$0xff]
  %v249 = vld [vmem:[%s4 + $0x8] sm:$0xff]
  %v250 = vld [vmem:[%s4 + $0x10] sm:$0xff]
  %v251 = vld [vmem:[%s4 + $0x18] sm:$0xff]
  %v252 = vld [vmem:[%s4 + $0x20] sm:$0x1]
  %v253 = vlaneseq
  %v254 = vshrl.u32 %v253, 7
  %v255 = vsub.s32 0, %v254
  %v256 = vrot.slane %v252, %v255
  %v258 = vsel %vm164, %v135, 0
  %v261 = vsel %vm164, %v136, 0
  %v264 = vsel %vm164, %v137, 0
  %v267 = vsel %vm164, %v138, 0
  %v270 = vsel %vm164, %v246, 0
  %v273 = vsel %vm164, %v247, 0
  %275 = vmatprep.subr.mxu0 0.0
  %276 = vmatpush1.msra.mxu0 0.0
  %277 = vmatprep.subr.mxu0 0.0
  %278 = vmatpush1.msra.mxu0 0.0
  %279 = vmatprep.subr.mxu0 0.0
  %280 = vmatpush1.msra.mxu0 0.0
  %281 = vmatprep.subr.mxu0 0.0
  %282 = vmatpush1.msra.mxu0 0.0
  %283 = vmatprep.subr.mxu0 0.0
  %284 = vmatpush1.msra.mxu0 0.0
  %285 = vmatprep.subr.mxu0 0.0
  %286 = vmatpush1.msra.mxu0 0.0
  %287 = vmatprep.subr.mxu0 0.0
  %288 = vmatpush1.msra.mxu0 0.0
  %289 = vmatprep.subr.mxu0 0.0
  %290 = vmatpush1.msra.mxu0 0.0
  %291 = vmatprep.subr.mxu0 0.0
  %292 = vmatpush1.msra.mxu0 0.0
  %293 = vmatprep.subr.mxu0 0.0
  %294 = vmatpush1.msra.mxu0 0.0
  %295 = vmatprep.subr.mxu0 0.0
  %296 = vmatpush1.msra.mxu0 0.0
  %297 = vmatprep.subr.mxu0 0.0
  %298 = vmatpush1.msra.mxu0 0.0
  %299 = vmatprep.subr.mxu0 0.0
  %300 = vmatpush1.msra.mxu0 %v251
  %301 = vmatprep.subr.mxu0 0.0
  %302 = vmatpush1.msra.mxu0 %v250
  %303 = vmatprep.subr.mxu0 0.0
  %304 = vmatpush1.msra.mxu0 %v249
  %305 = vmatprep.subr.mxu0 0.0
  %306 = vmatpush1.msra.mxu0 %v248
  %307 = vmatprep.subr.mxu0 0.0
  %308 = vmatpush2.msra.mxu0 0.0
  %309 = vmatprep.subr.mxu0 0.0
  %310 = vmatpush2.msra.mxu0 0.0
  %311 = vmatprep.subr.mxu0 0.0
  %312 = vmatpush2.msra.mxu0 0.0
  %313 = vmatprep.subr.mxu0 0.0
  %314 = vmatpush2.msra.mxu0 0.0
  %315 = vmatprep.subr.mxu0 0.0
  %316 = vmatpush2.msra.mxu0 0.0
  %317 = vmatprep.subr.mxu0 0.0
  %318 = vmatpush2.msra.mxu0 0.0
  %319 = vmatprep.subr.mxu0 0.0
  %320 = vmatpush2.msra.mxu0 0.0
  %321 = vmatprep.subr.mxu0 0.0
  %322 = vmatpush2.msra.mxu0 0.0
  %323 = vmatprep.subr.mxu0 0.0
  %324 = vmatpush2.msra.mxu0 0.0
  %325 = vmatprep.subr.mxu0 0.0
  %326 = vmatpush2.msra.mxu0 0.0
  %327 = vmatprep.subr.mxu0 0.0
  %328 = vmatpush2.msra.mxu0 0.0
  %329 = vmatprep.subr.mxu0 0.0
  %330 = vmatpush2.msra.mxu0 0.0
  %331 = vmatprep.subr.mxu0 0.0
  %332 = vmatpush2.msra.mxu0 0.0
  %333 = vmatprep.subr.mxu0 0.0
  %334 = vmatpush2.msra.mxu0 0.0
  %335 = vmatprep.subr.mxu0 0.0
  %336 = vmatpush2.msra.mxu0 0.0
  %337 = vmatprep.subr.mxu0 0.0
  %338 = vmatpush2.msra.mxu0 0.0
  %339 = vmatprep.mubr.f32.mxu0 0.0
  %340 = vmatmul.mubr.f32.gmra.mxu0 %v258
  %v341 = vpop.f32.mrf.mxu0
  %v342 = vadd.f32 %v256, %v341
  %v343 = vpop.f32.mrf.mxu0
  %344 = vmatprep.mubr.f32.mxu0 0.0
  %345 = vmatmul.mubr.f32.gmra.mxu0 %v261
  %v346 = vpop.f32.mrf.mxu0
  %v347 = vadd.f32 %v256, %v346
  %v348 = vpop.f32.mrf.mxu0
  %349 = vmatprep.mubr.f32.mxu0 0.0
  %350 = vmatmul.mubr.f32.gmra.mxu0 %v264
  %v351 = vpop.f32.mrf.mxu0
  %v352 = vadd.f32 %v256, %v351
  %v353 = vpop.f32.mrf.mxu0
  %354 = vmatprep.mubr.f32.mxu0 0.0
  %355 = vmatmul.mubr.f32.gmra.mxu0 %v267
  %v356 = vpop.f32.mrf.mxu0
  %v357 = vadd.f32 %v256, %v356
  %v358 = vpop.f32.mrf.mxu0
  %359 = vmatprep.mubr.f32.mxu0 0.0
  %360 = vmatmul.mubr.f32.gmra.mxu0 %v270
  %v361 = vpop.f32.mrf.mxu0
  %v362 = vadd.f32 %v256, %v361
  %v363 = vpop.f32.mrf.mxu0
  %364 = vmatprep.mubr.f32.mxu0 0.0
  %365 = vmatmul.mubr.f32.gmra.mxu0 %v273
  %v366 = vpop.f32.mrf.mxu0
  %v367 = vadd.f32 %v256, %v366
  %v368 = vpop.f32.mrf.mxu0
  %369 = vdwg.mxu0
  %v370 = vmax.f32 %v342, 0.0
  %v371 = vmax.f32 %v347, 0.0
  %v372 = vmax.f32 %v352, 0.0
  %v373 = vmax.f32 %v357, 0.0
  %v374 = vmax.f32 %v362, 0.0
  %v375 = vmax.f32 %v367, 0.0
  %v376 = vld [vmem:[%s5] sm:$0xff]
  %v377 = vld [vmem:[%s5 + $0x8] sm:$0xff]
  %v378 = vld [vmem:[%s5 + $0x10] sm:$0xff]
  %v379 = vld [vmem:[%s5 + $0x18] sm:$0xff]
  %v380 = vld [vmem:[%s5 + $0x20] sm:$0x1]
  %v381 = vlaneseq
  %v382 = vshrl.u32 %v381, 7
  %v383 = vsub.s32 0, %v382
  %v384 = vrot.slane %v380, %v383
  %v386 = vsel %vm164, %v374, 0
  %v389 = vsel %vm164, %v375, 0
  %391 = vmatprep.subr.mxu0 0.0
  %392 = vmatpush1.msra.mxu0 0.0
  %393 = vmatprep.subr.mxu0 0.0
  %394 = vmatpush1.msra.mxu0 0.0
  %395 = vmatprep.subr.mxu0 0.0
  %396 = vmatpush1.msra.mxu0 0.0
  %397 = vmatprep.subr.mxu0 0.0
  %398 = vmatpush1.msra.mxu0 0.0
  %399 = vmatprep.subr.mxu0 0.0
  %400 = vmatpush1.msra.mxu0 0.0
  %401 = vmatprep.subr.mxu0 0.0
  %402 = vmatpush1.msra.mxu0 0.0
  %403 = vmatprep.subr.mxu0 0.0
  %404 = vmatpush1.msra.mxu0 0.0
  %405 = vmatprep.subr.mxu0 0.0
  %406 = vmatpush1.msra.mxu0 0.0
  %407 = vmatprep.subr.mxu0 0.0
  %408 = vmatpush1.msra.mxu0 0.0
  %409 = vmatprep.subr.mxu0 0.0
  %410 = vmatpush1.msra.mxu0 0.0
  %411 = vmatprep.subr.mxu0 0.0
  %412 = vmatpush1.msra.mxu0 0.0
  %413 = vmatprep.subr.mxu0 0.0
  %414 = vmatpush1.msra.mxu0 0.0
  %415 = vmatprep.subr.mxu0 0.0
  %416 = vmatpush1.msra.mxu0 %v379
  %417 = vmatprep.subr.mxu0 0.0
  %418 = vmatpush1.msra.mxu0 %v378
  %419 = vmatprep.subr.mxu0 0.0
  %420 = vmatpush1.msra.mxu0 %v377
  %421 = vmatprep.subr.mxu0 0.0
  %422 = vmatpush1.msra.mxu0 %v376
  %423 = vmatprep.subr.mxu0 0.0
  %424 = vmatpush2.msra.mxu0 0.0
  %425 = vmatprep.subr.mxu0 0.0
  %426 = vmatpush2.msra.mxu0 0.0
  %427 = vmatprep.subr.mxu0 0.0
  %428 = vmatpush2.msra.mxu0 0.0
  %429 = vmatprep.subr.mxu0 0.0
  %430 = vmatpush2.msra.mxu0 0.0
  %431 = vmatprep.subr.mxu0 0.0
  %432 = vmatpush2.msra.mxu0 0.0
  %433 = vmatprep.subr.mxu0 0.0
  %434 = vmatpush2.msra.mxu0 0.0
  %435 = vmatprep.subr.mxu0 0.0
  %436 = vmatpush2.msra.mxu0 0.0
  %437 = vmatprep.subr.mxu0 0.0
  %438 = vmatpush2.msra.mxu0 0.0
  %439 = vmatprep.subr.mxu0 0.0
  %440 = vmatpush2.msra.mxu0 0.0
  %441 = vmatprep.subr.mxu0 0.0
  %442 = vmatpush2.msra.mxu0 0.0
  %443 = vmatprep.subr.mxu0 0.0
  %444 = vmatpush2.msra.mxu0 0.0
  %445 = vmatprep.subr.mxu0 0.0
  %446 = vmatpush2.msra.mxu0 0.0
  %447 = vmatprep.subr.mxu0 0.0
  %448 = vmatpush2.msra.mxu0 0.0
  %449 = vmatprep.subr.mxu0 0.0
  %450 = vmatpush2.msra.mxu0 0.0
  %451 = vmatprep.subr.mxu0 0.0
  %452 = vmatpush2.msra.mxu0 0.0
  %453 = vmatprep.subr.mxu0 0.0
  %454 = vmatpush2.msra.mxu0 0.0
  %455 = vmatprep.mubr.f32.mxu0 0.0
  %456 = vmatmul.mubr.f32.gmra.mxu0 %v386
  %v457 = vpop.f32.mrf.mxu0
  %v458 = vadd.f32 %v384, %v457
  %v459 = vpop.f32.mrf.mxu0
  %460 = vmatprep.mubr.f32.mxu0 0.0
  %461 = vmatmul.mubr.f32.gmra.mxu0 %v389
  %v462 = vpop.f32.mrf.mxu0
  %v463 = vadd.f32 %v384, %v462
  %v464 = vpop.f32.mrf.mxu0
  %465 = vdwg.mxu0
  %v466 = vmax.f32 %v458, 0.0
  %v467 = vmax.f32 %v463, 0.0
  %v468 = vld [vmem:[%s6] sm:$0xff]
  %v469 = vld [vmem:[%s6 + $0x8] sm:$0xff]
  %v470 = vld [vmem:[%s6 + $0x10] sm:$0xff]
  %v471 = vld [vmem:[%s6 + $0x18] sm:$0xff]
  %v472 = vld [vmem:[%s6 + $0x20] sm:$0x1]
  %v473 = vlaneseq
  %v474 = vshrl.u32 %v473, 7
  %v475 = vsub.s32 0, %v474
  %v476 = vrot.slane %v472, %v475
  %v478 = vsel %vm164, %v370, 0
  %v481 = vsel %vm164, %v371, 0
  %v484 = vsel %vm164, %v372, 0
  %v487 = vsel %vm164, %v373, 0
  %v490 = vsel %vm164, %v466, 0
  %v493 = vsel %vm164, %v467, 0
  %495 = vmatprep.subr.mxu0 0.0
  %496 = vmatpush1.msra.mxu0 0.0
  %497 = vmatprep.subr.mxu0 0.0
  %498 = vmatpush1.msra.mxu0 0.0
  %499 = vmatprep.subr.mxu0 0.0
  %500 = vmatpush1.msra.mxu0 0.0
  %501 = vmatprep.subr.mxu0 0.0
  %502 = vmatpush1.msra.mxu0 0.0
  %503 = vmatprep.subr.mxu0 0.0
  %504 = vmatpush1.msra.mxu0 0.0
  %505 = vmatprep.subr.mxu0 0.0
  %506 = vmatpush1.msra.mxu0 0.0
  %507 = vmatprep.subr.mxu0 0.0
  %508 = vmatpush1.msra.mxu0 0.0
  %509 = vmatprep.subr.mxu0 0.0
  %510 = vmatpush1.msra.mxu0 0.0
  %511 = vmatprep.subr.mxu0 0.0
  %512 = vmatpush1.msra.mxu0 0.0
  %513 = vmatprep.subr.mxu0 0.0
  %514 = vmatpush1.msra.mxu0 0.0
  %515 = vmatprep.subr.mxu0 0.0
  %516 = vmatpush1.msra.mxu0 0.0
  %517 = vmatprep.subr.mxu0 0.0
  %518 = vmatpush1.msra.mxu0 0.0
  %519 = vmatprep.subr.mxu0 0.0
  %520 = vmatpush1.msra.mxu0 %v471
  %521 = vmatprep.subr.mxu0 0.0
  %522 = vmatpush1.msra.mxu0 %v470
  %523 = vmatprep.subr.mxu0 0.0
  %524 = vmatpush1.msra.mxu0 %v469
  %525 = vmatprep.subr.mxu0 0.0
  %526 = vmatpush1.msra.mxu0 %v468
  %527 = vmatprep.subr.mxu0 0.0
  %528 = vmatpush2.msra.mxu0 0.0
  %529 = vmatprep.subr.mxu0 0.0
  %530 = vmatpush2.msra.mxu0 0.0
  %531 = vmatprep.subr.mxu0 0.0
  %532 = vmatpush2.msra.mxu0 0.0
  %533 = vmatprep.subr.mxu0 0.0
  %534 = vmatpush2.msra.mxu0 0.0
  %535 = vmatprep.subr.mxu0 0.0
  %536 = vmatpush2.msra.mxu0 0.0
  %537 = vmatprep.subr.mxu0 0.0
  %538 = vmatpush2.msra.mxu0 0.0
  %539 = vmatprep.subr.mxu0 0.0
  %540 = vmatpush2.msra.mxu0 0.0
  %541 = vmatprep.subr.mxu0 0.0
  %542 = vmatpush2.msra.mxu0 0.0
  %543 = vmatprep.subr.mxu0 0.0
  %544 = vmatpush2.msra.mxu0 0.0
  %545 = vmatprep.subr.mxu0 0.0
  %546 = vmatpush2.msra.mxu0 0.0
  %547 = vmatprep.subr.mxu0 0.0
  %548 = vmatpush2.msra.mxu0 0.0
  %549 = vmatprep.subr.mxu0 0.0
  %550 = vmatpush2.msra.mxu0 0.0
  %551 = vmatprep.subr.mxu0 0.0
  %552 = vmatpush2.msra.mxu0 0.0
  %553 = vmatprep.subr.mxu0 0.0
  %554 = vmatpush2.msra.mxu0 0.0
  %555 = vmatprep.subr.mxu0 0.0
  %556 = vmatpush2.msra.mxu0 0.0
  %557 = vmatprep.subr.mxu0 0.0
  %558 = vmatpush2.msra.mxu0 0.0
  %559 = vmatprep.mubr.f32.mxu0 0.0
  %560 = vmatmul.mubr.f32.gmra.mxu0 %v478
  %v561 = vpop.f32.mrf.mxu0
  %v562 = vadd.f32 %v476, %v561
  %v563 = vpop.f32.mrf.mxu0
  %564 = vmatprep.mubr.f32.mxu0 0.0
  %565 = vmatmul.mubr.f32.gmra.mxu0 %v481
  %v566 = vpop.f32.mrf.mxu0
  %v567 = vadd.f32 %v476, %v566
  %v568 = vpop.f32.mrf.mxu0
  %569 = vmatprep.mubr.f32.mxu0 0.0
  %570 = vmatmul.mubr.f32.gmra.mxu0 %v484
  %v571 = vpop.f32.mrf.mxu0
  %v572 = vadd.f32 %v476, %v571
  %v573 = vpop.f32.mrf.mxu0
  %574 = vmatprep.mubr.f32.mxu0 0.0
  %575 = vmatmul.mubr.f32.gmra.mxu0 %v487
  %v576 = vpop.f32.mrf.mxu0
  %v577 = vadd.f32 %v476, %v576
  %v578 = vpop.f32.mrf.mxu0
  %579 = vmatprep.mubr.f32.mxu0 0.0
  %580 = vmatmul.mubr.f32.gmra.mxu0 %v490
  %v581 = vpop.f32.mrf.mxu0
  %v582 = vadd.f32 %v476, %v581
  %v583 = vpop.f32.mrf.mxu0
  %584 = vmatprep.mubr.f32.mxu0 0.0
  %585 = vmatmul.mubr.f32.gmra.mxu0 %v493
  %v586 = vpop.f32.mrf.mxu0
  %v587 = vadd.f32 %v476, %v586
  %v588 = vpop.f32.mrf.mxu0
  %589 = vdwg.mxu0
  %590 = vst [vmem:[%s7] sm:$0xff] %v562
  %591 = vst [vmem:[%s7 + $0x8] sm:$0xff] %v567
  %592 = vst [vmem:[%s7 + $0x10] sm:$0xff] %v572
  %593 = vst [vmem:[%s7 + $0x18] sm:$0xff] %v577
  %594 = vst [vmem:[%s7 + $0x20] sm:$0xff] %v582
  %595 = vst [vmem:[%s7 + $0x28] sm:$0xff] %v587
  // Predicated region
  $region30: #{dhvani_forward.1} parent=0 // pred_check
    _
  $region31: #{dhvani_forward.1} parent=0 // pred_check_branch
    %597 = sbr.rel (0) target = $region33
  $region32: #{dhvani_forward.1} parent=0 // pred_region
    _
  $region33: #{dhvani_forward.1} parent=0 // pred_fallthru
    _
  // Predicated region
  $region34: #{dhvani_forward.1} parent=0 // pred_check
    _
  $region35: #{dhvani_forward.1} parent=0 // pred_check_branch
    %599 = sbr.rel (0) target = $region37
  $region36: #{dhvani_forward.1} parent=0 // pred_region
    _
  $region37: #{dhvani_forward.1} parent=0 // pred_fallthru
    _

</llo_original>
